<compile_context>
chip_gen: v5e
topology: v5e:2x2
jax: 0.10.0
libtpu: 0.0.40
codegen_flags: <defaults>
</compile_context>

<pallas_src>
import functools
import math

import jax
import jax.numpy as jnp
from jax.experimental import pallas as pl
from jax.experimental.pallas import tpu as pltpu


def _round_up(x, m):
    return ((x + m - 1) // m) * m


def _pick_tile(dim, cap, align):
    """Largest tile <= cap (multiple of `align`) that keeps padding minimal."""
    if dim <= cap:
        return _round_up(dim, align)
    nblocks = -(-dim // cap)                    # ceil(dim / cap)
    return _round_up(-(-dim // nblocks), align)  # ceil(dim / nblocks), aligned


def _activate(pre, activation):
    if activation == "sigmoid":
        return jax.nn.sigmoid(pre)
    if activation == "tanh":
        return jnp.tanh(pre)
    raise ValueError(f"unknown activation {activation!r}")


# Shapes up to this fit comfortably in a single VMEM block (a few MiB), so the
# grid / accumulator / pl.when machinery is pure fixed overhead below it.
_FAST_MAX_ROWS = 512
_FAST_MAX_COLS = 512


# ----------------------------- kernels --------------------------------------


def _gate_kernel_fast(w_ref, u_ref, x_ref, h_ref, bias_ref, o_ref, *,
                      activation, operand_dtype):
    """Whole problem in one VMEM block: act(W@x + U@h + bias)."""
    x = x_ref[...]
    h = h_ref[...]
    if operand_dtype is not None:
        x = x.astype(operand_dtype)   # in-kernel VPU cast, no extra HBM traffic
        h = h.astype(operand_dtype)
    pre = jnp.dot(w_ref[...], x, preferred_element_type=jnp.float32)
    pre = pre + jnp.dot(u_ref[...], h, preferred_element_type=jnp.float32)
    pre = pre + bias_ref[...].astype(jnp.float32)
    o_ref[...] = _activate(pre, activation).astype(o_ref.dtype)


def _gate_kernel_tiled(a_ref, b_ref, bias_ref, o_ref, acc_ref, *, activation):
    """One (tm, tn) tile of act(A @ B + bias), K innermost grid axis."""
    # program_id / num_programs only at kernel top level (never inside pl.when).
    k = pl.program_id(2)
    nk = pl.num_programs(2)

    @pl.when(k == 0)
    def _init():
        # Fold the bias into the accumulator -> no extra add in the epilogue.
        acc_ref[...] = bias_ref[...].astype(jnp.float32)

    acc_ref[...] += jnp.dot(a_ref[...], b_ref[...],
                            preferred_element_type=jnp.float32)

    @pl.when(k == nk - 1)
    def _finalize():
        o_ref[...] = _activate(acc_ref[...], activation).astype(o_ref.dtype)


# ------------------------- prepare / apply API -------------------------------


def prepare_mat_gru_gate(W, U, bias, *, activation="sigmoid",
                         operand_dtype=jnp.bfloat16):
    """Hoist per-timestep-invariant work (casts, concat, padding) out of the
    hot path.  Call once; reuse the result for every (x, hidden)."""
    rows, cols = bias.shape
    assert W.shape == (rows, rows) and U.shape == (rows, rows)
    od = operand_dtype

    if rows <= _FAST_MAX_ROWS and cols <= _FAST_MAX_COLS:
        Wp = W if od is None else W.astype(od)
        Up = U if od is None else U.astype(od)
        return dict(kind="fast", W=Wp, U=Up, bias=bias, rows=rows, cols=cols,
                    activation=activation, operand_dtype=od)

    # Large shapes: fused A = [W | U] against B = [x ; hidden], tiled grid.
    M, N, K = rows, cols, 2 * rows
    tm = _pick_tile(M, 256, 8)
    tn = _pick_tile(N, 512, 128)
    tk = _pick_tile(K, 1024, 128)
    Mp, Np, Kp = _round_up(M, tm), _round_up(N, tn), _round_up(K, tk)

    A = jnp.concatenate([W, U], axis=1)
    if od is not None:
        A = A.astype(od)
    if (Mp, Kp) != (M, K):
        A = jnp.pad(A, ((0, Mp - M), (0, Kp - K)))
    bias_p = bias if (Mp, Np) == (M, N) else jnp.pad(
        bias, ((0, Mp - M), (0, Np - N)))

    return dict(kind="tiled", A=A, bias=bias_p, rows=rows, cols=cols,
                activation=activation, operand_dtype=od,
                tiles=(tm, tn, tk), padded=(Mp, Np, Kp))


def apply_mat_gru_gate(params, x, hidden):
    rows, cols = params["rows"], params["cols"]
    assert x.shape == (rows, cols) and hidden.shape == (rows, cols)
    out_dtype = x.dtype
    activation = params["activation"]
    od = params["operand_dtype"]

    if params["kind"] == "fast":
        kernel = functools.partial(_gate_kernel_fast, activation=activation,
                                   operand_dtype=od)
        # No grid, no BlockSpecs: full arrays live in VMEM for the whole call.
        return pl.pallas_call(
            kernel,
            out_shape=jax.ShapeDtypeStruct((rows, cols), out_dtype),
        )(params["W"], params["U"], x, hidden, params["bias"])

    # Tiled / pipelined path for large shapes.
    tm, tn, tk = params["tiles"]
    Mp, Np, Kp = params["padded"]
    K, N = 2 * rows, cols

    B = jnp.concatenate([x, hidden], axis=0)
    if od is not None:
        B = B.astype(od)
    if (Kp, Np) != (K, N):
        B = jnp.pad(B, ((0, Kp - K), (0, Np - N)))

    grid = (Mp // tm, Np // tn, Kp // tk)
    kernel = functools.partial(_gate_kernel_tiled, activation=activation)

    out = pl.pallas_call(
        kernel,
        out_shape=jax.ShapeDtypeStruct((Mp, Np), out_dtype),
        grid_spec=pltpu.PrefetchScalarGridSpec(
            num_scalar_prefetch=0,
            grid=grid,
            in_specs=[
                pl.BlockSpec((tm, tk), lambda i, j, k: (i, k)),   # A = [W | U]
                pl.BlockSpec((tk, tn), lambda i, j, k: (k, j)),   # B = [x ; h]
                pl.BlockSpec((tm, tn), lambda i, j, k: (i, j)),   # bias
            ],
            out_specs=pl.BlockSpec((tm, tn), lambda i, j, k: (i, j)),
            scratch_shapes=[pltpu.VMEM((tm, tn), jnp.float32)],
        ),
        compiler_params=pltpu.CompilerParams(
            dimension_semantics=("parallel", "parallel", "arbitrary"),
        ),
    )(params["A"], B, params["bias"])

    if (Mp, Np) != (rows, cols):
        out = out[:rows, :cols]
    return out


def mat_gru_gate(W, U, bias, x, hidden, *, activation="sigmoid",
                 operand_dtype=jnp.bfloat16):
    """out = activation(W @ x + U @ hidden + bias)  (one-shot convenience)."""
    params = prepare_mat_gru_gate(W, U, bias, activation=activation,
                                  operand_dtype=operand_dtype)
    return apply_mat_gru_gate(params, x, hidden)


def init_gate_params(kw, ku, rows, cols, dtype=jnp.float32):
    """Deterministic re-implementation of mat_GRU_gate.__init__/reset_param."""
    stdv = 1.0 / math.sqrt(rows)   # t.size(1) == rows for both W and U
    W = jax.random.uniform(kw, (rows, rows), dtype, minval=-stdv, maxval=stdv)
    U = jax.random.uniform(ku, (rows, rows), dtype, minval=-stdv, maxval=stdv)
    bias = jnp.zeros((rows, cols), dtype)
    return W, U, bias


if __name__ == "__main__":
    key = jax.random.PRNGKey(0)
    keys = jax.random.split(key, 10)

    # --- Small, module-realistic shapes -> single-block fast path ---
    rows, cols = 32, 16
    W, U, _ = init_gate_params(keys[0], keys[1], rows, cols)
    # Random bias so the bias-add path is actually exercised (module inits to 0).
    bias = 0.1 * jax.random.normal(keys[2], (rows, cols), jnp.float32)
    x = jax.random.normal(keys[3], (rows, cols), jnp.float32)
    hidden = jax.random.normal(keys[4], (rows, cols), jnp.float32)

    ref_sig = jax.nn.sigmoid(W @ x + U @ hidden + bias)

    # f32 MXU operands: tight check against the PyTorch semantics.
    out_f32 = jax.block_until_ready(
        mat_gru_gate(W, U, bias, x, hidden, activation="sigmoid",
                     operand_dtype=None))
    assert out_f32.shape == (rows, cols)
    assert jnp.allclose(out_f32, ref_sig, atol=1e-5, rtol=1e-5)

    # Default bf16 MXU operands (f32 accumulation / f32 epilogue).
    out_bf16 = jax.block_until_ready(mat_gru_gate(W, U, bias, x, hidden))
    assert jnp.allclose(out_bf16, ref_sig, atol=2e-2, rtol=2e-2)

    # Hoisted prepare/apply form (what a GRU time-loop would use) + tanh gate.
    prep = prepare_mat_gru_gate(W, U, bias, activation="tanh",
                                operand_dtype=None)
    out_tanh = jax.block_until_ready(apply_mat_gru_gate(prep, x, hidden))
    ref_tanh = jnp.tanh(W @ x + U @ hidden + bias)
    assert jnp.allclose(out_tanh, ref_tanh, atol=1e-5, rtol=1e-5)

    # --- Large shapes -> tiled, pipelined path with K accumulation ---
    rows2, cols2 = 640, 256
    W2, U2, _ = init_gate_params(keys[5], keys[6], rows2, cols2)
    bias2 = 0.1 * jax.random.normal(keys[7], (rows2, cols2), jnp.float32)
    x2 = jax.random.normal(keys[8], (rows2, cols2), jnp.float32)
    h2 = jax.random.normal(keys[9], (rows2, cols2), jnp.float32)

    out2 = jax.block_until_ready(
        mat_gru_gate(W2, U2, bias2, x2, h2, activation="sigmoid",
                     operand_dtype=None))
    ref2 = jax.nn.sigmoid(W2 @ x2 + U2 @ h2 + bias2)
    assert out2.shape == (rows2, cols2)
    assert jnp.allclose(out2, ref2, atol=1e-4, rtol=1e-4)

    print("KERNEL_OK")
</pallas_src>

<mosaic_0001>
module attributes {stable_mosaic.version = 11 : i64} {
  func.func @_gate_kernel_fast(%arg0: memref<32x32xf32, #tpu.memory_space<vmem>>, %arg1: memref<32x32xf32, #tpu.memory_space<vmem>>, %arg2: memref<32x16xf32, #tpu.memory_space<vmem>>, %arg3: memref<32x16xf32, #tpu.memory_space<vmem>>, %arg4: memref<32x16xf32, #tpu.memory_space<vmem>>, %arg5: memref<32x16xf32, #tpu.memory_space<vmem>>) attributes {dimension_semantics = [], scalar_prefetch = 0 : i64, scratch_operands = 0 : i64, tpu.core_type = #tpu.core_type<tc>} {
    %c0 = arith.constant 0 : index
    %c0_0 = arith.constant 0 : index
    %0 = vector.load %arg2[%c0, %c0_0] : memref<32x16xf32, #tpu.memory_space<vmem>>, vector<32x16xf32>
    %c0_1 = arith.constant 0 : index
    %c0_2 = arith.constant 0 : index
    %1 = vector.load %arg3[%c0_1, %c0_2] : memref<32x16xf32, #tpu.memory_space<vmem>>, vector<32x16xf32>
    %c0_3 = arith.constant 0 : index
    %c0_4 = arith.constant 0 : index
    %2 = vector.load %arg0[%c0_3, %c0_4] : memref<32x32xf32, #tpu.memory_space<vmem>>, vector<32x32xf32>
    %cst = arith.constant dense<0.000000e+00> : vector<32x16xf32>
    %3 = tpu.matmul %2, %0, %cst {dimension_numbers = #tpu.dot_dimension_numbers<[1], [0], [0], [1], [0, 0, 1, 1], [], []>} : vector<32x32xf32>, vector<32x16xf32>, vector<32x16xf32> -> vector<32x16xf32>
    %c0_5 = arith.constant 0 : index
    %c0_6 = arith.constant 0 : index
    %4 = vector.load %arg1[%c0_5, %c0_6] : memref<32x32xf32, #tpu.memory_space<vmem>>, vector<32x32xf32>
    %cst_7 = arith.constant dense<0.000000e+00> : vector<32x16xf32>
    %5 = tpu.matmul %4, %1, %cst_7 {dimension_numbers = #tpu.dot_dimension_numbers<[1], [0], [0], [1], [0, 0, 1, 1], [], []>} : vector<32x32xf32>, vector<32x16xf32>, vector<32x16xf32> -> vector<32x16xf32>
    %6 = arith.addf %3, %5 : vector<32x16xf32>
    %c0_8 = arith.constant 0 : index
    %c0_9 = arith.constant 0 : index
    %7 = vector.load %arg4[%c0_8, %c0_9] : memref<32x16xf32, #tpu.memory_space<vmem>>, vector<32x16xf32>
    %8 = arith.addf %6, %7 : vector<32x16xf32>
    %9 = arith.negf %8 : vector<32x16xf32>
    %10 = math.exp %9 : vector<32x16xf32>
    %cst_10 = arith.constant 1.000000e+00 : f32
    %11 = vector.broadcast %cst_10 : f32 to vector<32x16xf32>
    %12 = arith.addf %11, %10 : vector<32x16xf32>
    %13 = arith.divf %11, %12 : vector<32x16xf32>
    %c0_11 = arith.constant 0 : index
    %c0_12 = arith.constant 0 : index
    %14 = vector.load %arg5[%c0_11, %c0_12] : memref<32x16xf32, #tpu.memory_space<vmem>>, vector<32x16xf32>
    tpu.vector_store %arg5[%c0_11, %c0_12], %13 {strides = array<i32>} : memref<32x16xf32, #tpu.memory_space<vmem>>, vector<32x16xf32>,
    return
  }
}

</mosaic_0001>

<llo_original>
// kernel: tpu_custom_call.1
$region0: #{tpu_custom_call.1}
  #allocation0 [shape = 'u32[]', space=smem, size = 0x4, offset = 0x4, fixed_abs, tag = 'smem constant byte address 0x4 - core index']
  #allocation1 [shape = 'u32[72,128]{1,0:T(1,128)}', space=vmem, size = 0x9000, scoped, tag = 'internal scratch']
  %s0 = inlined_call_operand.vmem [shape: f32[32,32], index: 0, kind: input, shape index: {}]
  %s1 = inlined_call_operand.vmem [shape: f32[32,32], index: 1, kind: input, shape index: {}]
  %s2 = inlined_call_operand.vmem [shape: f32[32,16], index: 2, kind: input, shape index: {}]
  %s3 = inlined_call_operand.vmem [shape: f32[32,16], index: 3, kind: input, shape index: {}]
  %s4 = inlined_call_operand.vmem [shape: f32[32,16], index: 4, kind: input, shape index: {}]
  %s5 = inlined_call_operand.vmem [shape: f32[32,16], index: 5, kind: output, shape index: {}]
  %s6 = sld [smem:[#allocation0]]
  $region30: #{tpu_custom_call.1} parent=0
    _
  %s8 = ssub.s32 1, %s6
  %s9 = scalar_select 0, %s8, %s6
  // Predicated region
  $region2: #{tpu_custom_call.1} parent=0 // pred_check
    _
  $region3: #{tpu_custom_call.1} parent=0 // pred_check_branch
    %11 = sbr.rel (0) target = $region5
  $region4: #{tpu_custom_call.1} parent=0 // pred_region
    _
  $region5: #{tpu_custom_call.1} parent=0 // pred_fallthru
    _
  // Predicated region
  $region6: #{tpu_custom_call.1} parent=0 // pred_check
    _
  $region7: #{tpu_custom_call.1} parent=0 // pred_check_branch
    %13 = sbr.rel (0) target = $region9
  $region8: #{tpu_custom_call.1} parent=0 // pred_region
    _
  $region9: #{tpu_custom_call.1} parent=0 // pred_fallthru
    _
  // Predicated region
  $region10: #{tpu_custom_call.1} parent=0 // pred_check
    _
  $region11: #{tpu_custom_call.1} parent=0 // pred_check_branch
    %15 = sbr.rel (0) target = $region13
  $region12: #{tpu_custom_call.1} parent=0 // pred_region
    _
  $region13: #{tpu_custom_call.1} parent=0 // pred_fallthru
    _
  // Predicated region
  $region14: #{tpu_custom_call.1} parent=0 // pred_check
    _
  $region15: #{tpu_custom_call.1} parent=0 // pred_check_branch
    %17 = sbr.rel (0) target = $region17
  $region16: #{tpu_custom_call.1} parent=0 // pred_region
    _
  $region17: #{tpu_custom_call.1} parent=0 // pred_fallthru
    _
  // Predicated region
  $region18: #{tpu_custom_call.1} parent=0 // pred_check
    _
  $region19: #{tpu_custom_call.1} parent=0 // pred_check_branch
    %19 = sbr.rel (0) target = $region21
  $region20: #{tpu_custom_call.1} parent=0 // pred_region
    _
  $region21: #{tpu_custom_call.1} parent=0 // pred_fallthru
    _
  %v20 = vld [vmem:[%s2] sm:$0xff]
  %v21 = vld [vmem:[%s2 + $0x8] sm:$0xff]
  %v22 = vld [vmem:[%s2 + $0x10] sm:$0xff]
  %v23 = vld [vmem:[%s2 + $0x18] sm:$0xff]
  %v24 = vld [vmem:[%s3] sm:$0xff]
  %v25 = vld [vmem:[%s3 + $0x8] sm:$0xff]
  %v26 = vld [vmem:[%s3 + $0x10] sm:$0xff]
  %v27 = vld [vmem:[%s3 + $0x18] sm:$0xff]
  %v28 = vld [vmem:[%s0] sm:$0xff]
  %v29 = vld [vmem:[%s0 + $0x8] sm:$0xff]
  %v30 = vld [vmem:[%s0 + $0x10] sm:$0xff]
  %v31 = vld [vmem:[%s0 + $0x18] sm:$0xff]
  %v32 = vld [vmem:[%s1] sm:$0xff]
  %v33 = vld [vmem:[%s1 + $0x8] sm:$0xff]
  %v34 = vld [vmem:[%s1 + $0x10] sm:$0xff]
  %v35 = vld [vmem:[%s1 + $0x18] sm:$0xff]
  %vm36 = vcmask 261120
  %v38 = vsel %vm36, %v32, 0
  %v41 = vsel %vm36, %v33, 0
  %v44 = vsel %vm36, %v34, 0
  %v47 = vsel %vm36, %v35, 0
  %49 = vmatpush.msra.mxu0 0.0
  %50 = vmatpush.msra.mxu0 0.0
  %51 = vmatpush.msra.mxu0 0.0
  %52 = vmatpush.msra.mxu0 0.0
  %53 = vmatpush.msra.mxu0 0.0
  %54 = vmatpush.msra.mxu0 0.0
  %55 = vmatpush.msra.mxu0 0.0
  %56 = vmatpush.msra.mxu0 0.0
  %57 = vmatpush.msra.mxu0 0.0
  %58 = vmatpush.msra.mxu0 0.0
  %59 = vmatpush.msra.mxu0 0.0
  %60 = vmatpush.msra.mxu0 0.0
  %61 = vmatpush.msra.mxu0 %v27
  %62 = vmatpush.msra.mxu0 %v26
  %63 = vmatpush.msra.mxu0 %v25
  %64 = vmatpush.msra.mxu0 %v24
  %65 = vmatmul.f32.gmra.mxu0 %v38
  %v66 = vpop.f32.mrf.mxu0
  %v67 = vadd.f32 0.0, %v66
  %68 = vmatmul.f32.gmra.mxu0 %v41
  %v69 = vpop.f32.mrf.mxu0
  %v70 = vadd.f32 0.0, %v69
  %71 = vmatmul.f32.gmra.mxu0 %v44
  %v72 = vpop.f32.mrf.mxu0
  %v73 = vadd.f32 0.0, %v72
  %74 = vmatmul.f32.gmra.mxu0 %v47
  %v75 = vpop.f32.mrf.mxu0
  %v76 = vadd.f32 0.0, %v75
  %77 = vdwg.mxu0
  %v79 = vsel %vm36, %v28, 0
  %v82 = vsel %vm36, %v29, 0
  %v85 = vsel %vm36, %v30, 0
  %v88 = vsel %vm36, %v31, 0
  %90 = vmatpush.msra.mxu0 0.0
  %91 = vmatpush.msra.mxu0 0.0
  %92 = vmatpush.msra.mxu0 0.0
  %93 = vmatpush.msra.mxu0 0.0
  %94 = vmatpush.msra.mxu0 0.0
  %95 = vmatpush.msra.mxu0 0.0
  %96 = vmatpush.msra.mxu0 0.0
  %97 = vmatpush.msra.mxu0 0.0
  %98 = vmatpush.msra.mxu0 0.0
  %99 = vmatpush.msra.mxu0 0.0
  %100 = vmatpush.msra.mxu0 0.0
  %101 = vmatpush.msra.mxu0 0.0
  %102 = vmatpush.msra.mxu0 %v23
  %103 = vmatpush.msra.mxu0 %v22
  %104 = vmatpush.msra.mxu0 %v21
  %105 = vmatpush.msra.mxu0 %v20
  %106 = vmatmul.f32.gmra.mxu0 %v79
  %v107 = vpop.f32.mrf.mxu0
  %v108 = vadd.f32 %v67, %v107
  %109 = vmatmul.f32.gmra.mxu0 %v82
  %v110 = vpop.f32.mrf.mxu0
  %v111 = vadd.f32 %v70, %v110
  %112 = vmatmul.f32.gmra.mxu0 %v85
  %v113 = vpop.f32.mrf.mxu0
  %v114 = vadd.f32 %v73, %v113
  %115 = vmatmul.f32.gmra.mxu0 %v88
  %v116 = vpop.f32.mrf.mxu0
  %v117 = vadd.f32 %v76, %v116
  %118 = vdwg.mxu0
  %v119 = vld [vmem:[%s4] sm:$0xff]
  %v120 = vld [vmem:[%s4 + $0x8] sm:$0xff]
  %v121 = vld [vmem:[%s4 + $0x10] sm:$0xff]
  %v122 = vld [vmem:[%s4 + $0x18] sm:$0xff]
  %v123 = vadd.f32 %v108, %v119
  %v124 = vadd.f32 %v111, %v120
  %v125 = vadd.f32 %v114, %v121
  %v126 = vadd.f32 %v117, %v122
  %v127 = vxor.u32 %v123, 2147483648
  %v128 = vxor.u32 %v124, 2147483648
  %v129 = vxor.u32 %v125, 2147483648
  %v130 = vxor.u32 %v126, 2147483648
  %v131 = vmul.f32 %v127, 1.442695
  %v132 = vpow.pop %v131
  %v133 = vmul.f32 %v128, 1.442695
  %v134 = vpow.pop %v133
  %v135 = vmul.f32 %v129, 1.442695
  %v136 = vpow.pop %v135
  %v137 = vmul.f32 %v130, 1.442695
  %v138 = vpow.pop %v137
  %v139 = vadd.f32 %v132, 1.0
  %v140 = vadd.f32 %v134, 1.0
  %v141 = vadd.f32 %v136, 1.0
  %v142 = vadd.f32 %v138, 1.0
  %v143 = vrcp.pop %v139
  %v144 = vmul.f32 %v139, %v143
  %v145 = vsub.f32 1.0, %v144
  %v146 = vmul.f32 %v143, %v145
  %v147 = vadd.f32 %v143, %v146
  %vm148 = vweird.f32 %v139
  %vm149 = vweird.f32 %v143
  %vm150 = vmor %vm148, %vm149
  %v151 = vsel %vm150, %v143, %v147
  %v152 = vand.u32 2147483647, %v139
  %vm153 = vcmp.eq.f32.partialorder %v152, 8.507059e+37
  %v154 = vand.u32 %v139, 2147483648
  %v155 = vor.u32 1.1754944e-38, %v154
  %v156 = vsel %vm153, %v155, %v151
  %v157 = vmul.f32 1.0, %v156
  %v158 = vrcp.pop %v140
  %v159 = vmul.f32 %v140, %v158
  %v160 = vsub.f32 1.0, %v159
  %v161 = vmul.f32 %v158, %v160
  %v162 = vadd.f32 %v158, %v161
  %vm163 = vweird.f32 %v140
  %vm164 = vweird.f32 %v158
  %vm165 = vmor %vm163, %vm164
  %v166 = vsel %vm165, %v158, %v162
  %v167 = vand.u32 2147483647, %v140
  %vm168 = vcmp.eq.f32.partialorder %v167, 8.507059e+37
  %v169 = vand.u32 %v140, 2147483648
  %v170 = vor.u32 1.1754944e-38, %v169
  %v171 = vsel %vm168, %v170, %v166
  %v172 = vmul.f32 1.0, %v171
  %v173 = vrcp.pop %v141
  %v174 = vmul.f32 %v141, %v173
  %v175 = vsub.f32 1.0, %v174
  %v176 = vmul.f32 %v173, %v175
  %v177 = vadd.f32 %v173, %v176
  %vm178 = vweird.f32 %v141
  %vm179 = vweird.f32 %v173
  %vm180 = vmor %vm178, %vm179
  %v181 = vsel %vm180, %v173, %v177
  %v182 = vand.u32 2147483647, %v141
  %vm183 = vcmp.eq.f32.partialorder %v182, 8.507059e+37
  %v184 = vand.u32 %v141, 2147483648
  %v185 = vor.u32 1.1754944e-38, %v184
  %v186 = vsel %vm183, %v185, %v181
  %v187 = vmul.f32 1.0, %v186
  %v188 = vrcp.pop %v142
  %v189 = vmul.f32 %v142, %v188
  %v190 = vsub.f32 1.0, %v189
  %v191 = vmul.f32 %v188, %v190
  %v192 = vadd.f32 %v188, %v191
  %vm193 = vweird.f32 %v142
  %vm194 = vweird.f32 %v188
  %vm195 = vmor %vm193, %vm194
  %v196 = vsel %vm195, %v188, %v192
  %v197 = vand.u32 2147483647, %v142
  %vm198 = vcmp.eq.f32.partialorder %v197, 8.507059e+37
  %v199 = vand.u32 %v142, 2147483648
  %v200 = vor.u32 1.1754944e-38, %v199
  %v201 = vsel %vm198, %v200, %v196
  %v202 = vmul.f32 1.0, %v201
  %vm203 = vcmask 130048
  %204 = vst.msk [vmem:[%s5] sm:$0xff] %vm203, %v157
  %205 = vst.msk [vmem:[%s5 + $0x8] sm:$0xff] %vm203, %v172
  %206 = vst.msk [vmem:[%s5 + $0x10] sm:$0xff] %vm203, %v187
  %207 = vst.msk [vmem:[%s5 + $0x18] sm:$0xff] %vm203, %v202
  // Predicated region
  $region22: #{tpu_custom_call.1} parent=0 // pred_check
    _
  $region23: #{tpu_custom_call.1} parent=0 // pred_check_branch
    %209 = sbr.rel (0) target = $region25
  $region24: #{tpu_custom_call.1} parent=0 // pred_region
    _
  $region25: #{tpu_custom_call.1} parent=0 // pred_fallthru
    _
  // Predicated region
  $region26: #{tpu_custom_call.1} parent=0 // pred_check
    _
  $region27: #{tpu_custom_call.1} parent=0 // pred_check_branch
    %211 = sbr.rel (0) target = $region29
  $region28: #{tpu_custom_call.1} parent=0 // pred_region
    _
  $region29: #{tpu_custom_call.1} parent=0 // pred_fallthru
    _

</llo_original>
